<compile_context>
chip_gen: v5e
topology: v5e:2x2
jax: 0.10.0
libtpu: 0.0.40
codegen_flags: <defaults>
</compile_context>

<pallas_src>
import functools

import jax
import jax.numpy as jnp
from jax.experimental import pallas as pl
from jax.experimental.pallas import tpu as pltpu


# ----------------------------- Pallas kernels --------------------------------
def _conv1_fused_kernel(a_ref, x_ref, w1_ref, b1_ref, w2_ref, o_ref, acc_ref):
    """acc[i] += A[i,k] @ (X[k] @ W1); finalize: (relu(acc + b1)) @ W2 -> o[i]."""
    k = pl.program_id(1)

    @pl.when(k == 0)
    def _():
        acc_ref[...] = jnp.zeros_like(acc_ref)

    # Feature transform for this k-tile of X.  Tiny (f_in = 4): the per-row-tile
    # recompute is negligible vs the O(N^2) aggregation matmul below.
    xw = jnp.dot(x_ref[...], w1_ref[...], preferred_element_type=jnp.float32)

    # Aggregation: bf16 x bf16 on the MXU, f32 accumulation in VMEM scratch.
    acc_ref[...] += jnp.dot(
        a_ref[...], xw.astype(jnp.bfloat16), preferred_element_type=jnp.float32
    )

    @pl.when(k == pl.num_programs(1) - 1)
    def _():
        h = jnp.maximum(acc_ref[...] + b1_ref[...], 0.0).astype(jnp.bfloat16)
        # Layer-2 feature transform fused here: computed exactly once per row tile.
        hw2 = jnp.dot(h, w2_ref[...], preferred_element_type=jnp.float32)
        o_ref[...] = hw2.astype(o_ref.dtype)


def _agg_bias_kernel(a_ref, xw_ref, b_ref, o_ref, acc_ref):
    """acc[i] += A[i,k] @ XW[k]; finalize: o[i] = acc + b."""
    k = pl.program_id(1)

    @pl.when(k == 0)
    def _():
        acc_ref[...] = jnp.zeros_like(acc_ref)

    acc_ref[...] += jnp.dot(
        a_ref[...], xw_ref[...], preferred_element_type=jnp.float32
    )

    @pl.when(k == pl.num_programs(1) - 1)
    def _():
        o_ref[...] = (acc_ref[...] + b_ref[...]).astype(o_ref.dtype)


# ------------------------------- wrapper --------------------------------------
def _round_up(x, m):
    return ((x + m - 1) // m) * m


@functools.partial(jax.jit, static_argnames=("tile",))
def vgcn_encoder_pallas(a_hat, x, params, *, tile=256):
    """Fused VGAE encoder forward. Returns (mu, logstd) as float32 [N, out_c]."""
    n, in_c = x.shape
    hid = params["w1"].shape[1]
    out_c = params["w_mu"].shape[1]
    two_out = 2 * out_c

    # Tile rows must be multiples of 8, tile cols multiples of 128.
    tm = tk = tile
    n_pad = max(_round_up(n, tile), tile)
    grid = (n_pad // tm, n_pad // tk)

    # Pad node dimension to a tile multiple; padded rows/cols of A are zero, so
    # padded entries contribute nothing and padded output rows are sliced off.
    a_pad = (
        jnp.zeros((n_pad, n_pad), jnp.float32).at[:n, :n].set(a_hat)
    ).astype(jnp.bfloat16)
    x_pad = (
        jnp.zeros((n_pad, in_c), jnp.float32).at[:n, :].set(x)
    ).astype(jnp.bfloat16)

    w1 = params["w1"].astype(jnp.bfloat16)
    b1 = params["b1"]
    # Fuse mu / logstd projections into one wide weight -> one aggregation matmul.
    w_cat = jnp.concatenate([params["w_mu"], params["w_logstd"]], axis=1).astype(
        jnp.bfloat16
    )
    b_cat = jnp.concatenate([params["b_mu"], params["b_logstd"]], axis=1)

    cparams = pltpu.CompilerParams(
        dimension_semantics=("parallel", "arbitrary"),
    )

    # Stage 1: HW2 = relu(A @ (X @ W1) + b1) @ [Wmu|Wls]   -> bf16 [n_pad, 2*out]
    hw2 = pl.pallas_call(
        _conv1_fused_kernel,
        out_shape=jax.ShapeDtypeStruct((n_pad, two_out), jnp.bfloat16),
        grid_spec=pltpu.PrefetchScalarGridSpec(
            num_scalar_prefetch=0,
            grid=grid,
            in_specs=[
                pl.BlockSpec((tm, tk), lambda i, k: (i, k)),        # A_hat tile
                pl.BlockSpec((tk, in_c), lambda i, k: (k, 0)),      # X rows (k-tile)
                pl.BlockSpec((in_c, hid), lambda i, k: (0, 0)),     # W1 (full)
                pl.BlockSpec((1, hid), lambda i, k: (0, 0)),        # b1 (full)
                pl.BlockSpec((hid, two_out), lambda i, k: (0, 0)),  # [Wmu|Wls] (full)
            ],
            out_specs=pl.BlockSpec((tm, two_out), lambda i, k: (i, 0)),
            scratch_shapes=[pltpu.VMEM((tm, hid), jnp.float32)],
        ),
        compiler_params=cparams,
    )(a_pad, x_pad, w1, b1, w_cat)

    # Stage 2: [mu|logstd] = A @ HW2 + [bmu|bls]            -> f32 [n_pad, 2*out]
    out = pl.pallas_call(
        _agg_bias_kernel,
        out_shape=jax.ShapeDtypeStruct((n_pad, two_out), jnp.float32),
        grid_spec=pltpu.PrefetchScalarGridSpec(
            num_scalar_prefetch=0,
            grid=grid,
            in_specs=[
                pl.BlockSpec((tm, tk), lambda i, k: (i, k)),        # A_hat tile
                pl.BlockSpec((tk, two_out), lambda i, k: (k, 0)),   # HW2 rows (k-tile)
                pl.BlockSpec((1, two_out), lambda i, k: (0, 0)),    # [bmu|bls] (full)
            ],
            out_specs=pl.BlockSpec((tm, two_out), lambda i, k: (i, 0)),
            scratch_shapes=[pltpu.VMEM((tm, two_out), jnp.float32)],
        ),
        compiler_params=cparams,
    )(a_pad, hw2, b_cat)

    out = out[:n]
    return out[:, :out_c], out[:, out_c:]


# ------------------------------- JAX glue --------------------------------------
def gcn_norm_dense(edge_index, num_nodes):
    """Dense D^{-1/2} (A + I) D^{-1/2} matching GCNConv(add_self_loops=True)."""
    # TODO(synk): true sparse scatter-based message passing is not expressed in
    # Pallas here; edge_index is densified to A_hat in plain JAX.
    src, dst = edge_index[0], edge_index[1]
    adj = jnp.zeros((num_nodes, num_nodes), jnp.float32).at[dst, src].add(1.0)
    adj = adj + jnp.eye(num_nodes, dtype=jnp.float32)
    deg = adj.sum(axis=1)
    dinv = jnp.where(deg > 0, 1.0 / jnp.sqrt(deg), 0.0)
    return dinv[:, None] * adj * dinv[None, :]


def glorot(key, fan_in, fan_out):
    lim = jnp.sqrt(6.0 / (fan_in + fan_out))
    return jax.random.uniform(key, (fan_in, fan_out), jnp.float32, -lim, lim)


def init_params(key, in_channels, hidden_channels, out_channels):
    k1, k2, k3 = jax.random.split(key, 3)
    return {
        "w1": glorot(k1, in_channels, hidden_channels),
        "b1": jnp.zeros((1, hidden_channels), jnp.float32),
        "w_mu": glorot(k2, hidden_channels, out_channels),
        "b_mu": jnp.zeros((1, out_channels), jnp.float32),
        "w_logstd": glorot(k3, hidden_channels, out_channels),
        "b_logstd": jnp.zeros((1, out_channels), jnp.float32),
    }


def vgcn_encoder_ref(a_hat, x, p):
    h = jnp.maximum(a_hat @ (x @ p["w1"]) + p["b1"], 0.0)
    mu = a_hat @ (h @ p["w_mu"]) + p["b_mu"]
    ls = a_hat @ (h @ p["w_logstd"]) + p["b_logstd"]
    return mu, ls


def ring_graph(n):
    src = jnp.concatenate([jnp.arange(n), (jnp.arange(n) + 1) % n])
    dst = jnp.concatenate([(jnp.arange(n) + 1) % n, jnp.arange(n)])
    return jnp.stack([src, dst]).astype(jnp.int32)   # [2, 2n] directed edges


# --------------------------------- main -----------------------------------------
if __name__ == "__main__":
    IN_C, HID_C, OUT_C = 4, 32, 16

    key = jax.random.PRNGKey(0)
    kp, kx_small, kx_big = jax.random.split(key, 3)
    params = init_params(kp, IN_C, HID_C, OUT_C)

    # bf16 A_hat / MXU operands introduce a few % drift vs the f32 reference.
    ATOL = RTOL = 5e-2

    # Small case (N=8 nodes, 4 features), plus a larger case that exercises the
    # multi-tile grid (n_pad=256, grid=(2,2)) and the k-axis accumulation.
    for n, kx in ((8, kx_small), (200, kx_big)):
        x = jax.random.normal(kx, (n, IN_C), jnp.float32)
        a_hat = gcn_norm_dense(ring_graph(n), n)

        mu, logstd = jax.block_until_ready(
            vgcn_encoder_pallas(a_hat, x, params, tile=128)
        )

        mu_ref, ls_ref = vgcn_encoder_ref(a_hat, x, params)
        assert mu.shape == (n, OUT_C) and logstd.shape == (n, OUT_C)
        assert jnp.allclose(mu, mu_ref, atol=ATOL, rtol=RTOL), float(
            jnp.max(jnp.abs(mu - mu_ref))
        )
        assert jnp.allclose(logstd, ls_ref, atol=ATOL, rtol=RTOL), float(
            jnp.max(jnp.abs(logstd - ls_ref))
        )

    print("KERNEL_OK")
</pallas_src>

<mosaic_0001>
module attributes {stable_mosaic.version = 11 : i64} {
  func.func @_conv1_fused_kernel(%arg0: i32, %arg1: i32, %arg2: memref<128x128xbf16, #tpu.memory_space<vmem>>, %arg3: memref<128x4xbf16, #tpu.memory_space<vmem>>, %arg4: memref<4x32xbf16, #tpu.memory_space<vmem>>, %arg5: memref<1x32xf32, #tpu.memory_space<vmem>>, %arg6: memref<32x32xbf16, #tpu.memory_space<vmem>>, %arg7: memref<128x32xbf16, #tpu.memory_space<vmem>>, %arg8: memref<128x32xf32, #tpu.memory_space<vmem>>) attributes {dimension_semantics = [#tpu.dimension_semantics<parallel>, #tpu.dimension_semantics<arbitrary>], iteration_bounds = array<i64: 1, 1>, scalar_prefetch = 0 : i64, scratch_operands = 1 : i64, tpu.core_type = #tpu.core_type<tc>, window_params = [{transform_indices = @transform_0, window_bounds = array<i64: 128, 128>}, {transform_indices = @transform_1, window_bounds = array<i64: 128, 4>}, {pipeline_mode = #tpu.pipeline_mode<synchronous>, transform_indices = @transform_2, window_bounds = array<i64: 4, 32>}, {pipeline_mode = #tpu.pipeline_mode<synchronous>, transform_indices = @transform_3, window_bounds = array<i64: 1, 32>}, {pipeline_mode = #tpu.pipeline_mode<synchronous>, transform_indices = @transform_4, window_bounds = array<i64: 32, 32>}, {transform_indices = @transform_5, window_bounds = array<i64: 128, 32>}]} {
    %c0_i32 = arith.constant 0 : i32
    %0 = arith.cmpi eq, %arg1, %c0_i32 : i32
    %1 = arith.extui %0 : i1 to i32
    %c0_i32_0 = arith.constant 0 : i32
    %2 = arith.cmpi ne, %1, %c0_i32_0 : i32
    scf.if %2 {
      %cst_13 = arith.constant 0.000000e+00 : f32
      %15 = vector.broadcast %cst_13 : f32 to vector<128x32xf32>
      %c0_14 = arith.constant 0 : index
      %c0_15 = arith.constant 0 : index
      %16 = vector.load %arg8[%c0_14, %c0_15] : memref<128x32xf32, #tpu.memory_space<vmem>>, vector<128x32xf32>
      tpu.vector_store %arg8[%c0_14, %c0_15], %15 {strides = array<i32>} : memref<128x32xf32, #tpu.memory_space<vmem>>, vector<128x32xf32>,
    } else {
    }
    %c0 = arith.constant 0 : index
    %c0_1 = arith.constant 0 : index
    %3 = vector.load %arg3[%c0, %c0_1] : memref<128x4xbf16, #tpu.memory_space<vmem>>, vector<128x4xbf16>
    %c0_2 = arith.constant 0 : index
    %c0_3 = arith.constant 0 : index
    %4 = vector.load %arg4[%c0_2, %c0_3] : memref<4x32xbf16, #tpu.memory_space<vmem>>, vector<4x32xbf16>
    %cst = arith.constant dense<0.000000e+00> : vector<128x32xf32>
    %5 = tpu.matmul %3, %4, %cst {dimension_numbers = #tpu.dot_dimension_numbers<[1], [0], [0], [1], [0, 0, 1, 1], [], []>} : vector<128x4xbf16>, vector<4x32xbf16>, vector<128x32xf32> -> vector<128x32xf32>
    %c0_4 = arith.constant 0 : index
    %c0_5 = arith.constant 0 : index
    %6 = vector.load %arg8[%c0_4, %c0_5] : memref<128x32xf32, #tpu.memory_space<vmem>>, vector<128x32xf32>
    %c0_6 = arith.constant 0 : index
    %c0_7 = arith.constant 0 : index
    %7 = vector.load %arg2[%c0_6, %c0_7] : memref<128x128xbf16, #tpu.memory_space<vmem>>, vector<128x128xbf16>
    %8 = arith.truncf %5 : vector<128x32xf32> to vector<128x32xbf16>
    %cst_8 = arith.constant dense<0.000000e+00> : vector<128x32xf32>
    %9 = tpu.matmul %7, %8, %cst_8 {dimension_numbers = #tpu.dot_dimension_numbers<[1], [0], [0], [1], [0, 0, 1, 1], [], []>} : vector<128x128xbf16>, vector<128x32xbf16>, vector<128x32xf32> -> vector<128x32xf32>
    %10 = arith.addf %6, %9 : vector<128x32xf32>
    %c0_9 = arith.constant 0 : index
    %c0_10 = arith.constant 0 : index
    %11 = vector.load %arg8[%c0_9, %c0_10] : memref<128x32xf32, #tpu.memory_space<vmem>>, vector<128x32xf32>
    tpu.vector_store %arg8[%c0_9, %c0_10], %10 {strides = array<i32>} : memref<128x32xf32, #tpu.memory_space<vmem>>, vector<128x32xf32>,
    %c0_i32_11 = arith.constant 0 : i32
    %12 = arith.cmpi eq, %arg1, %c0_i32_11 : i32
    %13 = arith.extui %12 : i1 to i32
    %c0_i32_12 = arith.constant 0 : i32
    %14 = arith.cmpi ne, %13, %c0_i32_12 : i32
    scf.if %14 {
      %c0_13 = arith.constant 0 : index
      %c0_14 = arith.constant 0 : index
      %15 = vector.load %arg8[%c0_13, %c0_14] : memref<128x32xf32, #tpu.memory_space<vmem>>, vector<128x32xf32>
      %c0_15 = arith.constant 0 : index
      %c0_16 = arith.constant 0 : index
      %16 = vector.load %arg5[%c0_15, %c0_16] : memref<1x32xf32, #tpu.memory_space<vmem>>, vector<1x32xf32>
      %17 = vector.broadcast %16 : vector<1x32xf32> to vector<128x32xf32>
      %18 = arith.addf %15, %17 : vector<128x32xf32>
      %cst_17 = arith.constant 0.000000e+00 : f32
      %19 = vector.broadcast %cst_17 : f32 to vector<128x32xf32>
      %20 = arith.maximumf %18, %19 : vector<128x32xf32>
      %21 = arith.truncf %20 : vector<128x32xf32> to vector<128x32xbf16>
      %c0_18 = arith.constant 0 : index
      %c0_19 = arith.constant 0 : index
      %22 = vector.load %arg6[%c0_18, %c0_19] : memref<32x32xbf16, #tpu.memory_space<vmem>>, vector<32x32xbf16>
      %cst_20 = arith.constant dense<0.000000e+00> : vector<128x32xf32>
      %23 = tpu.matmul %21, %22, %cst_20 {dimension_numbers = #tpu.dot_dimension_numbers<[1], [0], [0], [1], [0, 0, 1, 1], [], []>} : vector<128x32xbf16>, vector<32x32xbf16>, vector<128x32xf32> -> vector<128x32xf32>
      %24 = arith.truncf %23 : vector<128x32xf32> to vector<128x32xbf16>
      %c0_21 = arith.constant 0 : index
      %c0_22 = arith.constant 0 : index
      %25 = vector.load %arg7[%c0_21, %c0_22] : memref<128x32xbf16, #tpu.memory_space<vmem>>, vector<128x32xbf16>
      tpu.vector_store %arg7[%c0_21, %c0_22], %24 {strides = array<i32>} : memref<128x32xbf16, #tpu.memory_space<vmem>>, vector<128x32xbf16>,
    } else {
    }
    return
  }
  func.func @transform_0(%arg0: i32, %arg1: i32) -> (i32, i32) {
    %c0_i32 = arith.constant 0 : i32
    return %arg0, %arg1 : i32, i32
  }
  func.func @transform_1(%arg0: i32, %arg1: i32) -> (i32, i32) {
    %c0_i32 = arith.constant 0 : i32
    %c0_i32_0 = arith.constant 0 : i32
    return %arg1, %c0_i32 : i32, i32
  }
  func.func @transform_2(%arg0: i32, %arg1: i32) -> (i32, i32) {
    %c0_i32 = arith.constant 0 : i32
    %c0_i32_0 = arith.constant 0 : i32
    %c0_i32_1 = arith.constant 0 : i32
    return %c0_i32, %c0_i32_0 : i32, i32
  }
  func.func @transform_3(%arg0: i32, %arg1: i32) -> (i32, i32) {
    %c0_i32 = arith.constant 0 : i32
    %c0_i32_0 = arith.constant 0 : i32
    %c0_i32_1 = arith.constant 0 : i32
    return %c0_i32, %c0_i32_0 : i32, i32
  }
  func.func @transform_4(%arg0: i32, %arg1: i32) -> (i32, i32) {
    %c0_i32 = arith.constant 0 : i32
    %c0_i32_0 = arith.constant 0 : i32
    %c0_i32_1 = arith.constant 0 : i32
    return %c0_i32, %c0_i32_0 : i32, i32
  }
  func.func @transform_5(%arg0: i32, %arg1: i32) -> (i32, i32) {
    %c0_i32 = arith.constant 0 : i32
    %c0_i32_0 = arith.constant 0 : i32
    return %arg0, %c0_i32 : i32, i32
  }
}

module attributes {stable_mosaic.version = 11 : i64} {
  func.func @_agg_bias_kernel(%arg0: i32, %arg1: i32, %arg2: memref<128x128xbf16, #tpu.memory_space<vmem>>, %arg3: memref<128x32xbf16, #tpu.memory_space<vmem>>, %arg4: memref<1x32xf32, #tpu.memory_space<vmem>>, %arg5: memref<128x32xf32, #tpu.memory_space<vmem>>, %arg6: memref<128x32xf32, #tpu.memory_space<vmem>>) attributes {dimension_semantics = [#tpu.dimension_semantics<parallel>, #tpu.dimension_semantics<arbitrary>], iteration_bounds = array<i64: 1, 1>, scalar_prefetch = 0 : i64, scratch_operands = 1 : i64, tpu.core_type = #tpu.core_type<tc>, window_params = [{transform_indices = @transform_0, window_bounds = array<i64: 128, 128>}, {transform_indices = @transform_1, window_bounds = array<i64: 128, 32>}, {pipeline_mode = #tpu.pipeline_mode<synchronous>, transform_indices = @transform_2, window_bounds = array<i64: 1, 32>}, {transform_indices = @transform_3, window_bounds = array<i64: 128, 32>}]} {
    %c0_i32 = arith.constant 0 : i32
    %0 = arith.cmpi eq, %arg1, %c0_i32 : i32
    %1 = arith.extui %0 : i1 to i32
    %c0_i32_0 = arith.constant 0 : i32
    %2 = arith.cmpi ne, %1, %c0_i32_0 : i32
    scf.if %2 {
      %cst_10 = arith.constant 0.000000e+00 : f32
      %12 = vector.broadcast %cst_10 : f32 to vector<128x32xf32>
      %c0_11 = arith.constant 0 : index
      %c0_12 = arith.constant 0 : index
      %13 = vector.load %arg6[%c0_11, %c0_12] : memref<128x32xf32, #tpu.memory_space<vmem>>, vector<128x32xf32>
      tpu.vector_store %arg6[%c0_11, %c0_12], %12 {strides = array<i32>} : memref<128x32xf32, #tpu.memory_space<vmem>>, vector<128x32xf32>,
    } else {
    }
    %c0 = arith.constant 0 : index
    %c0_1 = arith.constant 0 : index
    %3 = vector.load %arg6[%c0, %c0_1] : memref<128x32xf32, #tpu.memory_space<vmem>>, vector<128x32xf32>
    %c0_2 = arith.constant 0 : index
    %c0_3 = arith.constant 0 : index
    %4 = vector.load %arg2[%c0_2, %c0_3] : memref<128x128xbf16, #tpu.memory_space<vmem>>, vector<128x128xbf16>
    %c0_4 = arith.constant 0 : index
    %c0_5 = arith.constant 0 : index
    %5 = vector.load %arg3[%c0_4, %c0_5] : memref<128x32xbf16, #tpu.memory_space<vmem>>, vector<128x32xbf16>
    %cst = arith.constant dense<0.000000e+00> : vector<128x32xf32>
    %6 = tpu.matmul %4, %5, %cst {dimension_numbers = #tpu.dot_dimension_numbers<[1], [0], [0], [1], [0, 0, 1, 1], [], []>} : vector<128x128xbf16>, vector<128x32xbf16>, vector<128x32xf32> -> vector<128x32xf32>
    %7 = arith.addf %3, %6 : vector<128x32xf32>
    %c0_6 = arith.constant 0 : index
    %c0_7 = arith.constant 0 : index
    %8 = vector.load %arg6[%c0_6, %c0_7] : memref<128x32xf32, #tpu.memory_space<vmem>>, vector<128x32xf32>
    tpu.vector_store %arg6[%c0_6, %c0_7], %7 {strides = array<i32>} : memref<128x32xf32, #tpu.memory_space<vmem>>, vector<128x32xf32>,
    %c0_i32_8 = arith.constant 0 : i32
    %9 = arith.cmpi eq, %arg1, %c0_i32_8 : i32
    %10 = arith.extui %9 : i1 to i32
    %c0_i32_9 = arith.constant 0 : i32
    %11 = arith.cmpi ne, %10, %c0_i32_9 : i32
    scf.if %11 {
      %c0_10 = arith.constant 0 : index
      %c0_11 = arith.constant 0 : index
      %12 = vector.load %arg6[%c0_10, %c0_11] : memref<128x32xf32, #tpu.memory_space<vmem>>, vector<128x32xf32>
      %c0_12 = arith.constant 0 : index
      %c0_13 = arith.constant 0 : index
      %13 = vector.load %arg4[%c0_12, %c0_13] : memref<1x32xf32, #tpu.memory_space<vmem>>, vector<1x32xf32>
      %14 = vector.broadcast %13 : vector<1x32xf32> to vector<128x32xf32>
      %15 = arith.addf %12, %14 : vector<128x32xf32>
      %c0_14 = arith.constant 0 : index
      %c0_15 = arith.constant 0 : index
      %16 = vector.load %arg5[%c0_14, %c0_15] : memref<128x32xf32, #tpu.memory_space<vmem>>, vector<128x32xf32>
      tpu.vector_store %arg5[%c0_14, %c0_15], %15 {strides = array<i32>} : memref<128x32xf32, #tpu.memory_space<vmem>>, vector<128x32xf32>,
    } else {
    }
    return
  }
  func.func @transform_0(%arg0: i32, %arg1: i32) -> (i32, i32) {
    %c0_i32 = arith.constant 0 : i32
    return %arg0, %arg1 : i32, i32
  }
  func.func @transform_1(%arg0: i32, %arg1: i32) -> (i32, i32) {
    %c0_i32 = arith.constant 0 : i32
    %c0_i32_0 = arith.constant 0 : i32
    return %arg1, %c0_i32 : i32, i32
  }
  func.func @transform_2(%arg0: i32, %arg1: i32) -> (i32, i32) {
    %c0_i32 = arith.constant 0 : i32
    %c0_i32_0 = arith.constant 0 : i32
    %c0_i32_1 = arith.constant 0 : i32
    return %c0_i32, %c0_i32_0 : i32, i32
  }
  func.func @transform_3(%arg0: i32, %arg1: i32) -> (i32, i32) {
    %c0_i32 = arith.constant 0 : i32
    %c0_i32_0 = arith.constant 0 : i32
    return %arg0, %c0_i32 : i32, i32
  }
}

</mosaic_0001>

<llo_original>
// kernel: vgcn_encoder_pallas.2
$region0: #{vgcn_encoder_pallas.2}
  #allocation0 [shape = 'u32[]', space=smem, size = 0x4, offset = 0x4, fixed_abs, tag = 'smem constant byte address 0x4 - core index']
  #allocation1 [shape = 'u32[72,128]{1,0:T(1,128)}', space=vmem, size = 0x9000, scoped, tag = 'internal scratch']
  #allocation2 [shape = 'f32[128,32]{1,0:T(8,128)}', space=vmem, size = 0x10000, scoped, tag = 'scratch operand']
  %s0 = inlined_call_operand.vmem [shape: bf16[128,128], index: 0, kind: input, shape index: {}]
  %s1 = inlined_call_operand.vmem [shape: bf16[128,4], index: 1, kind: input, shape index: {}]
  %s2 = inlined_call_operand.vmem [shape: bf16[4,32], index: 2, kind: input, shape index: {}]
  %s3 = inlined_call_operand.vmem [shape: f32[1,32], index: 3, kind: input, shape index: {}]
  %s4 = inlined_call_operand.vmem [shape: bf16[32,32], index: 4, kind: input, shape index: {}]
  %s5 = inlined_call_operand.vmem [shape: bf16[128,32], index: 5, kind: output, shape index: {}]
  %s6 = sld [smem:[#allocation0]]
  $region38: #{vgcn_encoder_pallas.2} parent=0
    _
  %s8 = ssub.s32 1, %s6
  %s9 = scalar_select 0, %s8, %s6
  // Predicated region
  $region2: #{vgcn_encoder_pallas.2} parent=0 // pred_check
    _
  $region3: #{vgcn_encoder_pallas.2} parent=0 // pred_check_branch
    %11 = sbr.rel (0) target = $region5
  $region4: #{vgcn_encoder_pallas.2} parent=0 // pred_region
    _
  $region5: #{vgcn_encoder_pallas.2} parent=0 // pred_fallthru
    _
  // Predicated region
  $region6: #{vgcn_encoder_pallas.2} parent=0 // pred_check
    _
  $region7: #{vgcn_encoder_pallas.2} parent=0 // pred_check_branch
    %13 = sbr.rel (0) target = $region9
  $region8: #{vgcn_encoder_pallas.2} parent=0 // pred_region
    _
  $region9: #{vgcn_encoder_pallas.2} parent=0 // pred_fallthru
    _
  // Predicated region
  $region10: #{vgcn_encoder_pallas.2} parent=0 // pred_check
    _
  $region11: #{vgcn_encoder_pallas.2} parent=0 // pred_check_branch
    %15 = sbr.rel (0) target = $region13
  $region12: #{vgcn_encoder_pallas.2} parent=0 // pred_region
    _
  $region13: #{vgcn_encoder_pallas.2} parent=0 // pred_fallthru
    _
  // Predicated region
  $region14: #{vgcn_encoder_pallas.2} parent=0 // pred_check
    _
  $region15: #{vgcn_encoder_pallas.2} parent=0 // pred_check_branch
    %17 = sbr.rel (0) target = $region17
  $region16: #{vgcn_encoder_pallas.2} parent=0 // pred_region
    _
  $region17: #{vgcn_encoder_pallas.2} parent=0 // pred_fallthru
    _
  // Predicated region
  $region18: #{vgcn_encoder_pallas.2} parent=0 // pred_check
    _
  $region19: #{vgcn_encoder_pallas.2} parent=0 // pred_check_branch
    %19 = sbr.rel (0) target = $region21
  $region20: #{vgcn_encoder_pallas.2} parent=0 // pred_region
    _
  $region21: #{vgcn_encoder_pallas.2} parent=0 // pred_fallthru
    _
  %p21 = scmp.eq.s32.totalorder 0, 0
  // Predicated region
  $region22: #{vgcn_encoder_pallas.2} parent=0 // pred_check
    %p22 = pneg %p21
  $region23: #{vgcn_encoder_pallas.2} parent=0 // pred_check_branch
    %24 = sbr.rel (%p22) target = $region25
  $region24: #{vgcn_encoder_pallas.2} parent=0 // pred_region
    %vm25 = vcmask 261120
    %26 = vst.msk [vmem:[#allocation2] sm:$0xff] %vm25, 0.0
    %27 = vst.msk [vmem:[#allocation2 + $0x8] sm:$0xff] %vm25, 0.0
    %28 = vst.msk [vmem:[#allocation2 + $0x10] sm:$0xff] %vm25, 0.0
    %29 = vst.msk [vmem:[#allocation2 + $0x18] sm:$0xff] %vm25, 0.0
    %30 = vst.msk [vmem:[#allocation2 + $0x20] sm:$0xff] %vm25, 0.0
    %31 = vst.msk [vmem:[#allocation2 + $0x28] sm:$0xff] %vm25, 0.0
    %32 = vst.msk [vmem:[#allocation2 + $0x30] sm:$0xff] %vm25, 0.0
    %33 = vst.msk [vmem:[#allocation2 + $0x38] sm:$0xff] %vm25, 0.0
    %34 = vst.msk [vmem:[#allocation2 + $0x40] sm:$0xff] %vm25, 0.0
    %35 = vst.msk [vmem:[#allocation2 + $0x48] sm:$0xff] %vm25, 0.0
    %36 = vst.msk [vmem:[#allocation2 + $0x50] sm:$0xff] %vm25, 0.0
    %37 = vst.msk [vmem:[#allocation2 + $0x58] sm:$0xff] %vm25, 0.0
    %38 = vst.msk [vmem:[#allocation2 + $0x60] sm:$0xff] %vm25, 0.0
    %39 = vst.msk [vmem:[#allocation2 + $0x68] sm:$0xff] %vm25, 0.0
    %40 = vst.msk [vmem:[#allocation2 + $0x70] sm:$0xff] %vm25, 0.0
    %41 = vst.msk [vmem:[#allocation2 + $0x78] sm:$0xff] %vm25, 0.0
  $region25: #{vgcn_encoder_pallas.2} parent=0 // pred_fallthru
    _
  %v42 = vld [vmem:[%s1] sm:$0xf]
  %v43 = vld [vmem:[%s1 + $0x4] sm:$0xf]
  %v44 = vld [vmem:[%s1 + $0x8] sm:$0xf]
  %v45 = vld [vmem:[%s1 + $0xc] sm:$0xf]
  %v46 = vld [vmem:[%s1 + $0x10] sm:$0xf]
  %v47 = vld [vmem:[%s1 + $0x14] sm:$0xf]
  %v48 = vld [vmem:[%s1 + $0x18] sm:$0xf]
  %v49 = vld [vmem:[%s1 + $0x1c] sm:$0xf]
  %v50 = vld [vmem:[%s1 + $0x20] sm:$0xf]
  %v51 = vld [vmem:[%s1 + $0x24] sm:$0xf]
  %v52 = vld [vmem:[%s1 + $0x28] sm:$0xf]
  %v53 = vld [vmem:[%s1 + $0x2c] sm:$0xf]
  %v54 = vld [vmem:[%s1 + $0x30] sm:$0xf]
  %v55 = vld [vmem:[%s1 + $0x34] sm:$0xf]
  %v56 = vld [vmem:[%s1 + $0x38] sm:$0xf]
  %v57 = vld [vmem:[%s1 + $0x3c] sm:$0xf]
  %v58 = vld [vmem:[%s2] sm:$0x3]
  %v75 = vunpack.c.l.b16 %v42
  %v76 = vunpack.c.l.b16 %v43
  %v77 = vunpack.c.l.b16 %v44
  %v78 = vunpack.c.l.b16 %v45
  %v79 = vunpack.c.l.b16 %v46
  %v80 = vunpack.c.l.b16 %v47
  %v81 = vunpack.c.l.b16 %v48
  %v82 = vunpack.c.l.b16 %v49
  %v83 = vunpack.c.l.b16 %v50
  %v84 = vunpack.c.l.b16 %v51
  %v85 = vunpack.c.l.b16 %v52
  %v86 = vunpack.c.l.b16 %v53
  %v87 = vunpack.c.l.b16 %v54
  %v88 = vunpack.c.l.b16 %v55
  %v89 = vunpack.c.l.b16 %v56
  %v90 = vunpack.c.l.b16 %v57
  %v91 = vpack.c.b16 %v76, %v75
  %v92 = vpack.c.b16 %v78, %v77
  %v93 = vpack.c.b16 %v80, %v79
  %v94 = vpack.c.b16 %v82, %v81
  %v95 = vpack.c.b16 %v84, %v83
  %v96 = vpack.c.b16 %v86, %v85
  %v97 = vpack.c.b16 %v88, %v87
  %v98 = vpack.c.b16 %v90, %v89
  %vm99 = vcmask 31744
  %v101 = vsel %vm99, %v91, 0
  %v104 = vsel %vm99, %v92, 0
  %v107 = vsel %vm99, %v93, 0
  %v110 = vsel %vm99, %v94, 0
  %v113 = vsel %vm99, %v95, 0
  %v116 = vsel %vm99, %v96, 0
  %v119 = vsel %vm99, %v97, 0
  %v122 = vsel %vm99, %v98, 0
  %vm124 = vcmask 1041408
  %v126 = vsel %vm124, %v58, 0
  %128 = vmatpush.bf16.msra.mxu0 0
  %129 = vmatpush.bf16.msra.mxu0 0
  %130 = vmatpush.bf16.msra.mxu0 0
  %131 = vmatpush.bf16.msra.mxu0 0
  %132 = vmatpush.bf16.msra.mxu0 0
  %133 = vmatpush.bf16.msra.mxu0 0
  %134 = vmatpush.bf16.msra.mxu0 0
  %135 = vmatpush.bf16.msra.mxu0 %v126
  %136 = vmatmul.bf16.gmra.mxu0 %v101
  %v137 = vpop.f32.mrf.mxu0
  %v138 = vadd.f32 0.0, %v137
  %v139 = vpop.f32.mrf.mxu0
  %v140 = vadd.f32 0.0, %v139
  %141 = vmatmul.bf16.gmra.mxu0 %v104
  %v142 = vpop.f32.mrf.mxu0
  %v143 = vadd.f32 0.0, %v142
  %v144 = vpop.f32.mrf.mxu0
  %v145 = vadd.f32 0.0, %v144
  %146 = vmatmul.bf16.gmra.mxu0 %v107
  %v147 = vpop.f32.mrf.mxu0
  %v148 = vadd.f32 0.0, %v147
  %v149 = vpop.f32.mrf.mxu0
  %v150 = vadd.f32 0.0, %v149
  %151 = vmatmul.bf16.gmra.mxu0 %v110
  %v152 = vpop.f32.mrf.mxu0
  %v153 = vadd.f32 0.0, %v152
  %v154 = vpop.f32.mrf.mxu0
  %v155 = vadd.f32 0.0, %v154
  %156 = vmatmul.bf16.gmra.mxu0 %v113
  %v157 = vpop.f32.mrf.mxu0
  %v158 = vadd.f32 0.0, %v157
  %v159 = vpop.f32.mrf.mxu0
  %v160 = vadd.f32 0.0, %v159
  %161 = vmatmul.bf16.gmra.mxu0 %v116
  %v162 = vpop.f32.mrf.mxu0
  %v163 = vadd.f32 0.0, %v162
  %v164 = vpop.f32.mrf.mxu0
  %v165 = vadd.f32 0.0, %v164
  %166 = vmatmul.bf16.gmra.mxu0 %v119
  %v167 = vpop.f32.mrf.mxu0
  %v168 = vadd.f32 0.0, %v167
  %v169 = vpop.f32.mrf.mxu0
  %v170 = vadd.f32 0.0, %v169
  %171 = vmatmul.bf16.gmra.mxu0 %v122
  %v172 = vpop.f32.mrf.mxu0
  %v173 = vadd.f32 0.0, %v172
  %v174 = vpop.f32.mrf.mxu0
  %v175 = vadd.f32 0.0, %v174
  %176 = vdwg.mxu0
  %v177 = vld [vmem:[#allocation2] sm:$0xff]
  %v178 = vld [vmem:[#allocation2 + $0x8] sm:$0xff]
  %v179 = vld [vmem:[#allocation2 + $0x10] sm:$0xff]
  %v180 = vld [vmem:[#allocation2 + $0x18] sm:$0xff]
  %v181 = vld [vmem:[#allocation2 + $0x20] sm:$0xff]
  %v182 = vld [vmem:[#allocation2 + $0x28] sm:$0xff]
  %v183 = vld [vmem:[#allocation2 + $0x30] sm:$0xff]
  %v184 = vld [vmem:[#allocation2 + $0x38] sm:$0xff]
  %v185 = vld [vmem:[#allocation2 + $0x40] sm:$0xff]
  %v186 = vld [vmem:[#allocation2 + $0x48] sm:$0xff]
  %v187 = vld [vmem:[#allocation2 + $0x50] sm:$0xff]
  %v188 = vld [vmem:[#allocation2 + $0x58] sm:$0xff]
  %v189 = vld [vmem:[#allocation2 + $0x60] sm:$0xff]
  %v190 = vld [vmem:[#allocation2 + $0x68] sm:$0xff]
  %v191 = vld [vmem:[#allocation2 + $0x70] sm:$0xff]
  %v192 = vld [vmem:[#allocation2 + $0x78] sm:$0xff]
  %v193 = vld [vmem:[%s0] sm:$0xf]
  %v194 = vld [vmem:[%s0 + $0x4] sm:$0xf]
  %v195 = vld [vmem:[%s0 + $0x8] sm:$0xf]
  %v196 = vld [vmem:[%s0 + $0xc] sm:$0xf]
  %v197 = vld [vmem:[%s0 + $0x10] sm:$0xf]
  %v198 = vld [vmem:[%s0 + $0x14] sm:$0xf]
  %v199 = vld [vmem:[%s0 + $0x18] sm:$0xf]
  %v200 = vld [vmem:[%s0 + $0x1c] sm:$0xf]
  %v201 = vld [vmem:[%s0 + $0x20] sm:$0xf]
  %v202 = vld [vmem:[%s0 + $0x24] sm:$0xf]
  %v203 = vld [vmem:[%s0 + $0x28] sm:$0xf]
  %v204 = vld [vmem:[%s0 + $0x2c] sm:$0xf]
  %v205 = vld [vmem:[%s0 + $0x30] sm:$0xf]
  %v206 = vld [vmem:[%s0 + $0x34] sm:$0xf]
  %v207 = vld [vmem:[%s0 + $0x38] sm:$0xf]
  %v208 = vld [vmem:[%s0 + $0x3c] sm:$0xf]
  %v209 = vpack.c.bf16 %v140, %v138
  %v210 = vpack.c.bf16 %v145, %v143
  %v211 = vpack.c.bf16 %v150, %v148
  %v212 = vpack.c.bf16 %v155, %v153
  %v213 = vpack.c.bf16 %v160, %v158
  %v214 = vpack.c.bf16 %v165, %v163
  %v215 = vpack.c.bf16 %v170, %v168
  %v216 = vpack.c.bf16 %v175, %v173
  %v233 = vunpack.c.l.b16 %v193
  %v234 = vunpack.c.l.b16 %v194
  %v235 = vunpack.c.l.b16 %v195
  %v236 = vunpack.c.l.b16 %v196
  %v237 = vunpack.c.l.b16 %v197
  %v238 = vunpack.c.l.b16 %v198
  %v239 = vunpack.c.l.b16 %v199
  %v240 = vunpack.c.l.b16 %v200
  %v241 = vunpack.c.l.b16 %v201
  %v242 = vunpack.c.l.b16 %v202
  %v243 = vunpack.c.l.b16 %v203
  %v244 = vunpack.c.l.b16 %v204
  %v245 = vunpack.c.l.b16 %v205
  %v246 = vunpack.c.l.b16 %v206
  %v247 = vunpack.c.l.b16 %v207
  %v248 = vunpack.c.l.b16 %v208
  %v249 = vpack.c.b16 %v234, %v233
  %v250 = vpack.c.b16 %v236, %v235
  %v251 = vpack.c.b16 %v238, %v237
  %v252 = vpack.c.b16 %v240, %v239
  %v253 = vpack.c.b16 %v242, %v241
  %v254 = vpack.c.b16 %v244, %v243
  %v255 = vpack.c.b16 %v246, %v245
  %v256 = vpack.c.b16 %v248, %v247
  %265 = vmatpush.bf16.msra.mxu0 %v216
  %266 = vmatpush.bf16.msra.mxu0 %v215
  %267 = vmatpush.bf16.msra.mxu0 %v214
  %268 = vmatpush.bf16.msra.mxu0 %v213
  %269 = vmatpush.bf16.msra.mxu0 %v212
  %270 = vmatpush.bf16.msra.mxu0 %v211
  %271 = vmatpush.bf16.msra.mxu0 %v210
  %272 = vmatpush.bf16.msra.mxu0 %v209
  %273 = vmatmul.bf16.gmra.mxu0 %v249
  %v274 = vpop.f32.mrf.mxu0
  %v275 = vadd.f32 0.0, %v274
  %v276 = vpop.f32.mrf.mxu0
  %v277 = vadd.f32 0.0, %v276
  %278 = vmatmul.bf16.gmra.mxu0 %v250
  %v279 = vpop.f32.mrf.mxu0
  %v280 = vadd.f32 0.0, %v279
  %v281 = vpop.f32.mrf.mxu0
  %v282 = vadd.f32 0.0, %v281
  %283 = vmatmul.bf16.gmra.mxu0 %v251
  %v284 = vpop.f32.mrf.mxu0
  %v285 = vadd.f32 0.0, %v284
  %v286 = vpop.f32.mrf.mxu0
  %v287 = vadd.f32 0.0, %v286
  %288 = vmatmul.bf16.gmra.mxu0 %v252
  %v289 = vpop.f32.mrf.mxu0
  %v290 = vadd.f32 0.0, %v289
  %v291 = vpop.f32.mrf.mxu0
  %v292 = vadd.f32 0.0, %v291
  %293 = vmatmul.bf16.gmra.mxu0 %v253
  %v294 = vpop.f32.mrf.mxu0
  %v295 = vadd.f32 0.0, %v294
  %v296 = vpop.f32.mrf.mxu0
  %v297 = vadd.f32 0.0, %v296
  %298 = vmatmul.bf16.gmra.mxu0 %v254
  %v299 = vpop.f32.mrf.mxu0
  %v300 = vadd.f32 0.0, %v299
  %v301 = vpop.f32.mrf.mxu0
  %v302 = vadd.f32 0.0, %v301
  %303 = vmatmul.bf16.gmra.mxu0 %v255
  %v304 = vpop.f32.mrf.mxu0
  %v305 = vadd.f32 0.0, %v304
  %v306 = vpop.f32.mrf.mxu0
  %v307 = vadd.f32 0.0, %v306
  %308 = vmatmul.bf16.gmra.mxu0 %v256
  %v309 = vpop.f32.mrf.mxu0
  %v310 = vadd.f32 0.0, %v309
  %v311 = vpop.f32.mrf.mxu0
  %v312 = vadd.f32 0.0, %v311
  %313 = vdwg.mxu0
  %v314 = vadd.f32 %v177, %v275
  %v315 = vadd.f32 %v178, %v277
  %v316 = vadd.f32 %v179, %v280
  %v317 = vadd.f32 %v180, %v282
  %v318 = vadd.f32 %v181, %v285
  %v319 = vadd.f32 %v182, %v287
  %v320 = vadd.f32 %v183, %v290
  %v321 = vadd.f32 %v184, %v292
  %v322 = vadd.f32 %v185, %v295
  %v323 = vadd.f32 %v186, %v297
  %v324 = vadd.f32 %v187, %v300
  %v325 = vadd.f32 %v188, %v302
  %v326 = vadd.f32 %v189, %v305
  %v327 = vadd.f32 %v190, %v307
  %v328 = vadd.f32 %v191, %v310
  %v329 = vadd.f32 %v192, %v312
  %vm330 = vcmask 261120
  %331 = vst.msk [vmem:[#allocation2] sm:$0xff] %vm330, %v314
  %332 = vst.msk [vmem:[#allocation2 + $0x8] sm:$0xff] %vm330, %v315
  %333 = vst.msk [vmem:[#allocation2 + $0x10] sm:$0xff] %vm330, %v316
  %334 = vst.msk [vmem:[#allocation2 + $0x18] sm:$0xff] %vm330, %v317
  %335 = vst.msk [vmem:[#allocation2 + $0x20] sm:$0xff] %vm330, %v318
  %336 = vst.msk [vmem:[#allocation2 + $0x28] sm:$0xff] %vm330, %v319
  %337 = vst.msk [vmem:[#allocation2 + $0x30] sm:$0xff] %vm330, %v320
  %338 = vst.msk [vmem:[#allocation2 + $0x38] sm:$0xff] %vm330, %v321
  %339 = vst.msk [vmem:[#allocation2 + $0x40] sm:$0xff] %vm330, %v322
  %340 = vst.msk [vmem:[#allocation2 + $0x48] sm:$0xff] %vm330, %v323
  %341 = vst.msk [vmem:[#allocation2 + $0x50] sm:$0xff] %vm330, %v324
  %342 = vst.msk [vmem:[#allocation2 + $0x58] sm:$0xff] %vm330, %v325
  %343 = vst.msk [vmem:[#allocation2 + $0x60] sm:$0xff] %vm330, %v326
  %344 = vst.msk [vmem:[#allocation2 + $0x68] sm:$0xff] %vm330, %v327
  %345 = vst.msk [vmem:[#allocation2 + $0x70] sm:$0xff] %vm330, %v328
  %346 = vst.msk [vmem:[#allocation2 + $0x78] sm:$0xff] %vm330, %v329
  // Predicated region
  $region26: #{vgcn_encoder_pallas.2} parent=0 // pred_check
    %p347 = pneg %p21
  $region27: #{vgcn_encoder_pallas.2} parent=0 // pred_check_branch
    %349 = sbr.rel (%p347) target = $region29
  $region28: #{vgcn_encoder_pallas.2} parent=0 // pred_region
    %v350 = vld [vmem:[#allocation2] sm:$0xff]
    %v351 = vld [vmem:[#allocation2 + $0x8] sm:$0xff]
    %v352 = vld [vmem:[#allocation2 + $0x10] sm:$0xff]
    %v353 = vld [vmem:[#allocation2 + $0x18] sm:$0xff]
    %v354 = vld [vmem:[#allocation2 + $0x20] sm:$0xff]
    %v355 = vld [vmem:[#allocation2 + $0x28] sm:$0xff]
    %v356 = vld [vmem:[#allocation2 + $0x30] sm:$0xff]
    %v357 = vld [vmem:[#allocation2 + $0x38] sm:$0xff]
    %v358 = vld [vmem:[#allocation2 + $0x40] sm:$0xff]
    %v359 = vld [vmem:[#allocation2 + $0x48] sm:$0xff]
    %v360 = vld [vmem:[#allocation2 + $0x50] sm:$0xff]
    %v361 = vld [vmem:[#allocation2 + $0x58] sm:$0xff]
    %v362 = vld [vmem:[#allocation2 + $0x60] sm:$0xff]
    %v363 = vld [vmem:[#allocation2 + $0x68] sm:$0xff]
    %v364 = vld [vmem:[#allocation2 + $0x70] sm:$0xff]
    %v365 = vld [vmem:[#allocation2 + $0x78] sm:$0xff]
    %v366 = vld [vmem:[%s3] sm:$0x1]
    %v368 = vperm.slane %v366, 0
    %v370 = vadd.f32 %v350, %v368
    %v371 = vadd.f32 %v351, %v368
    %v372 = vadd.f32 %v352, %v368
    %v373 = vadd.f32 %v353, %v368
    %v374 = vadd.f32 %v354, %v368
    %v375 = vadd.f32 %v355, %v368
    %v376 = vadd.f32 %v356, %v368
    %v377 = vadd.f32 %v357, %v368
    %v378 = vadd.f32 %v358, %v368
    %v379 = vadd.f32 %v359, %v368
    %v380 = vadd.f32 %v360, %v368
    %v381 = vadd.f32 %v361, %v368
    %v382 = vadd.f32 %v362, %v368
    %v383 = vadd.f32 %v363, %v368
    %v384 = vadd.f32 %v364, %v368
    %v385 = vadd.f32 %v365, %v368
    %v386 = vmax.f32 %v370, 0.0
    %v387 = vmax.f32 %v371, 0.0
    %v388 = vmax.f32 %v372, 0.0
    %v389 = vmax.f32 %v373, 0.0
    %v390 = vmax.f32 %v374, 0.0
    %v391 = vmax.f32 %v375, 0.0
    %v392 = vmax.f32 %v376, 0.0
    %v393 = vmax.f32 %v377, 0.0
    %v394 = vmax.f32 %v378, 0.0
    %v395 = vmax.f32 %v379, 0.0
    %v396 = vmax.f32 %v380, 0.0
    %v397 = vmax.f32 %v381, 0.0
    %v398 = vmax.f32 %v382, 0.0
    %v399 = vmax.f32 %v383, 0.0
    %v400 = vmax.f32 %v384, 0.0
    %v401 = vmax.f32 %v385, 0.0
    %v402 = vpack.c.bf16 %v387, %v386
    %v403 = vpack.c.bf16 %v389, %v388
    %v404 = vpack.c.bf16 %v391, %v390
    %v405 = vpack.c.bf16 %v393, %v392
    %v406 = vpack.c.bf16 %v395, %v394
    %v407 = vpack.c.bf16 %v397, %v396
    %v408 = vpack.c.bf16 %v399, %v398
    %v409 = vpack.c.bf16 %v401, %v400
    %v410 = vld [vmem:[%s4] sm:$0xf]
    %v411 = vld [vmem:[%s4 + $0x4] sm:$0xf]
    %v412 = vld [vmem:[%s4 + $0x8] sm:$0xf]
    %v413 = vld [vmem:[%s4 + $0xc] sm:$0xf]
    %v418 = vunpack.c.l.b16 %v410
    %v419 = vunpack.c.l.b16 %v411
    %v420 = vunpack.c.l.b16 %v412
    %v421 = vunpack.c.l.b16 %v413
    %v422 = vpack.c.b16 %v419, %v418
    %v423 = vpack.c.b16 %v421, %v420
    %v427 = vsel %vm330, %v402, 0
    %v430 = vsel %vm330, %v403, 0
    %v433 = vsel %vm330, %v404, 0
    %v436 = vsel %vm330, %v405, 0
    %v439 = vsel %vm330, %v406, 0
    %v442 = vsel %vm330, %v407, 0
    %v445 = vsel %vm330, %v408, 0
    %v448 = vsel %vm330, %v409, 0
    %450 = vmatpush.bf16.msra.mxu0 0
    %451 = vmatpush.bf16.msra.mxu0 0
    %452 = vmatpush.bf16.msra.mxu0 0
    %453 = vmatpush.bf16.msra.mxu0 0
    %454 = vmatpush.bf16.msra.mxu0 0
    %455 = vmatpush.bf16.msra.mxu0 0
    %456 = vmatpush.bf16.msra.mxu0 %v423
    %457 = vmatpush.bf16.msra.mxu0 %v422
    %458 = vmatmul.bf16.gmra.mxu0 %v427
    %v459 = vpop.f32.mrf.mxu0
    %v460 = vadd.f32 0.0, %v459
    %v461 = vpop.f32.mrf.mxu0
    %v462 = vadd.f32 0.0, %v461
    %463 = vmatmul.bf16.gmra.mxu0 %v430
    %v464 = vpop.f32.mrf.mxu0
    %v465 = vadd.f32 0.0, %v464
    %v466 = vpop.f32.mrf.mxu0
    %v467 = vadd.f32 0.0, %v466
    %468 = vmatmul.bf16.gmra.mxu0 %v433
    %v469 = vpop.f32.mrf.mxu0
    %v470 = vadd.f32 0.0, %v469
    %v471 = vpop.f32.mrf.mxu0
    %v472 = vadd.f32 0.0, %v471
    %473 = vmatmul.bf16.gmra.mxu0 %v436
    %v474 = vpop.f32.mrf.mxu0
    %v475 = vadd.f32 0.0, %v474
    %v476 = vpop.f32.mrf.mxu0
    %v477 = vadd.f32 0.0, %v476
    %478 = vmatmul.bf16.gmra.mxu0 %v439
    %v479 = vpop.f32.mrf.mxu0
    %v480 = vadd.f32 0.0, %v479
    %v481 = vpop.f32.mrf.mxu0
    %v482 = vadd.f32 0.0, %v481
    %483 = vmatmul.bf16.gmra.mxu0 %v442
    %v484 = vpop.f32.mrf.mxu0
    %v485 = vadd.f32 0.0, %v484
    %v486 = vpop.f32.mrf.mxu0
    %v487 = vadd.f32 0.0, %v486
    %488 = vmatmul.bf16.gmra.mxu0 %v445
    %v489 = vpop.f32.mrf.mxu0
    %v490 = vadd.f32 0.0, %v489
    %v491 = vpop.f32.mrf.mxu0
    %v492 = vadd.f32 0.0, %v491
    %493 = vmatmul.bf16.gmra.mxu0 %v448
    %v494 = vpop.f32.mrf.mxu0
    %v495 = vadd.f32 0.0, %v494
    %v496 = vpop.f32.mrf.mxu0
    %v497 = vadd.f32 0.0, %v496
    %498 = vdwg.mxu0
    %v499 = vpack.c.bf16 %v460, %v460
    %v500 = vpack.c.bf16 %v462, %v462
    %v501 = vpack.c.bf16 %v465, %v465
    %v502 = vpack.c.bf16 %v467, %v467
    %v503 = vpack.c.bf16 %v470, %v470
    %v504 = vpack.c.bf16 %v472, %v472
    %v505 = vpack.c.bf16 %v475, %v475
    %v506 = vpack.c.bf16 %v477, %v477
    %v507 = vpack.c.bf16 %v480, %v480
    %v508 = vpack.c.bf16 %v482, %v482
    %v509 = vpack.c.bf16 %v485, %v485
    %v510 = vpack.c.bf16 %v487, %v487
    %v511 = vpack.c.bf16 %v490, %v490
    %v512 = vpack.c.bf16 %v492, %v492
    %v513 = vpack.c.bf16 %v495, %v495
    %v514 = vpack.c.bf16 %v497, %v497
    %vm515 = vcmask 257024
    %516 = vst.msk [vmem:[%s5] sm:$0xf] %vm515, %v499
    %517 = vst.msk [vmem:[%s5 + $0x4] sm:$0xf] %vm515, %v500
    %518 = vst.msk [vmem:[%s5 + $0x8] sm:$0xf] %vm515, %v501
    %519 = vst.msk [vmem:[%s5 + $0xc] sm:$0xf] %vm515, %v502
    %520 = vst.msk [vmem:[%s5 + $0x10] sm:$0xf] %vm515, %v503
    %521 = vst.msk [vmem:[%s5 + $0x14] sm:$0xf] %vm515, %v504
    %522 = vst.msk [vmem:[%s5 + $0x18] sm:$0xf] %vm515, %v505
    %523 = vst.msk [vmem:[%s5 + $0x1c] sm:$0xf] %vm515, %v506
    %524 = vst.msk [vmem:[%s5 + $0x20] sm:$0xf] %vm515, %v507
    %525 = vst.msk [vmem:[%s5 + $0x24] sm:$0xf] %vm515, %v508
    %526 = vst.msk [vmem:[%s5 + $0x28] sm:$0xf] %vm515, %v509
    %527 = vst.msk [vmem:[%s5 + $0x2c] sm:$0xf] %vm515, %v510
    %528 = vst.msk [vmem:[%s5 + $0x30] sm:$0xf] %vm515, %v511
    %529 = vst.msk [vmem:[%s5 + $0x34] sm:$0xf] %vm515, %v512
    %530 = vst.msk [vmem:[%s5 + $0x38] sm:$0xf] %vm515, %v513
    %531 = vst.msk [vmem:[%s5 + $0x3c] sm:$0xf] %vm515, %v514
  $region29: #{vgcn_encoder_pallas.2} parent=0 // pred_fallthru
    _
  // Predicated region
  $region30: #{vgcn_encoder_pallas.2} parent=0 // pred_check
    _
  $region31: #{vgcn_encoder_pallas.2} parent=0 // pred_check_branch
    %533 = sbr.rel (0) target = $region33
  $region32: #{vgcn_encoder_pallas.2} parent=0 // pred_region
    _
  $region33: #{vgcn_encoder_pallas.2} parent=0 // pred_fallthru
    _
  // Predicated region
  $region34: #{vgcn_encoder_pallas.2} parent=0 // pred_check
    _
  $region35: #{vgcn_encoder_pallas.2} parent=0 // pred_check_branch
    %535 = sbr.rel (0) target = $region37
  $region36: #{vgcn_encoder_pallas.2} parent=0 // pred_region
    _
  $region37: #{vgcn_encoder_pallas.2} parent=0 // pred_fallthru
    _

// kernel: vgcn_encoder_pallas.3
$region0: #{vgcn_encoder_pallas.3}
  #allocation0 [shape = 'u32[]', space=smem, size = 0x4, offset = 0x4, fixed_abs, tag = 'smem constant byte address 0x4 - core index']
  #allocation1 [shape = 'u32[72,128]{1,0:T(1,128)}', space=vmem, size = 0x9000, scoped, tag = 'internal scratch']
  #allocation2 [shape = 'f32[128,32]{1,0:T(8,128)}', space=vmem, size = 0x10000, scoped, tag = 'scratch operand']
  %s0 = inlined_call_operand.vmem [shape: bf16[128,128], index: 0, kind: input, shape index: {}]
  %s1 = inlined_call_operand.vmem [shape: bf16[128,32], index: 1, kind: input, shape index: {}]
  %s2 = inlined_call_operand.vmem [shape: f32[1,32], index: 2, kind: input, shape index: {}]
  %s3 = inlined_call_operand.vmem [shape: f32[128,32], index: 3, kind: output, shape index: {}]
  %s4 = sld [smem:[#allocation0]]
  $region30: #{vgcn_encoder_pallas.3} parent=0
    _
  %s6 = ssub.s32 1, %s4
  %s7 = scalar_select 0, %s6, %s4
  // Predicated region
  $region2: #{vgcn_encoder_pallas.3} parent=0 // pred_check
    _
  $region3: #{vgcn_encoder_pallas.3} parent=0 // pred_check_branch
    %9 = sbr.rel (0) target = $region5
  $region4: #{vgcn_encoder_pallas.3} parent=0 // pred_region
    _
  $region5: #{vgcn_encoder_pallas.3} parent=0 // pred_fallthru
    _
  // Predicated region
  $region6: #{vgcn_encoder_pallas.3} parent=0 // pred_check
    _
  $region7: #{vgcn_encoder_pallas.3} parent=0 // pred_check_branch
    %11 = sbr.rel (0) target = $region9
  $region8: #{vgcn_encoder_pallas.3} parent=0 // pred_region
    _
  $region9: #{vgcn_encoder_pallas.3} parent=0 // pred_fallthru
    _
  // Predicated region
  $region10: #{vgcn_encoder_pallas.3} parent=0 // pred_check
    _
  $region11: #{vgcn_encoder_pallas.3} parent=0 // pred_check_branch
    %13 = sbr.rel (0) target = $region13
  $region12: #{vgcn_encoder_pallas.3} parent=0 // pred_region
    _
  $region13: #{vgcn_encoder_pallas.3} parent=0 // pred_fallthru
    _
  %p14 = scmp.eq.s32.totalorder 0, 0
  // Predicated region
  $region14: #{vgcn_encoder_pallas.3} parent=0 // pred_check
    %p15 = pneg %p14
  $region15: #{vgcn_encoder_pallas.3} parent=0 // pred_check_branch
    %17 = sbr.rel (%p15) target = $region17
  $region16: #{vgcn_encoder_pallas.3} parent=0 // pred_region
    %vm18 = vcmask 261120
    %19 = vst.msk [vmem:[#allocation2] sm:$0xff] %vm18, 0.0
    %20 = vst.msk [vmem:[#allocation2 + $0x8] sm:$0xff] %vm18, 0.0
    %21 = vst.msk [vmem:[#allocation2 + $0x10] sm:$0xff] %vm18, 0.0
    %22 = vst.msk [vmem:[#allocation2 + $0x18] sm:$0xff] %vm18, 0.0
    %23 = vst.msk [vmem:[#allocation2 + $0x20] sm:$0xff] %vm18, 0.0
    %24 = vst.msk [vmem:[#allocation2 + $0x28] sm:$0xff] %vm18, 0.0
    %25 = vst.msk [vmem:[#allocation2 + $0x30] sm:$0xff] %vm18, 0.0
    %26 = vst.msk [vmem:[#allocation2 + $0x38] sm:$0xff] %vm18, 0.0
    %27 = vst.msk [vmem:[#allocation2 + $0x40] sm:$0xff] %vm18, 0.0
    %28 = vst.msk [vmem:[#allocation2 + $0x48] sm:$0xff] %vm18, 0.0
    %29 = vst.msk [vmem:[#allocation2 + $0x50] sm:$0xff] %vm18, 0.0
    %30 = vst.msk [vmem:[#allocation2 + $0x58] sm:$0xff] %vm18, 0.0
    %31 = vst.msk [vmem:[#allocation2 + $0x60] sm:$0xff] %vm18, 0.0
    %32 = vst.msk [vmem:[#allocation2 + $0x68] sm:$0xff] %vm18, 0.0
    %33 = vst.msk [vmem:[#allocation2 + $0x70] sm:$0xff] %vm18, 0.0
    %34 = vst.msk [vmem:[#allocation2 + $0x78] sm:$0xff] %vm18, 0.0
  $region17: #{vgcn_encoder_pallas.3} parent=0 // pred_fallthru
    _
  %v35 = vld [vmem:[#allocation2] sm:$0xff]
  %v36 = vld [vmem:[#allocation2 + $0x8] sm:$0xff]
  %v37 = vld [vmem:[#allocation2 + $0x10] sm:$0xff]
  %v38 = vld [vmem:[#allocation2 + $0x18] sm:$0xff]
  %v39 = vld [vmem:[#allocation2 + $0x20] sm:$0xff]
  %v40 = vld [vmem:[#allocation2 + $0x28] sm:$0xff]
  %v41 = vld [vmem:[#allocation2 + $0x30] sm:$0xff]
  %v42 = vld [vmem:[#allocation2 + $0x38] sm:$0xff]
  %v43 = vld [vmem:[#allocation2 + $0x40] sm:$0xff]
  %v44 = vld [vmem:[#allocation2 + $0x48] sm:$0xff]
  %v45 = vld [vmem:[#allocation2 + $0x50] sm:$0xff]
  %v46 = vld [vmem:[#allocation2 + $0x58] sm:$0xff]
  %v47 = vld [vmem:[#allocation2 + $0x60] sm:$0xff]
  %v48 = vld [vmem:[#allocation2 + $0x68] sm:$0xff]
  %v49 = vld [vmem:[#allocation2 + $0x70] sm:$0xff]
  %v50 = vld [vmem:[#allocation2 + $0x78] sm:$0xff]
  %v51 = vld [vmem:[%s0] sm:$0xf]
  %v52 = vld [vmem:[%s0 + $0x4] sm:$0xf]
  %v53 = vld [vmem:[%s0 + $0x8] sm:$0xf]
  %v54 = vld [vmem:[%s0 + $0xc] sm:$0xf]
  %v55 = vld [vmem:[%s0 + $0x10] sm:$0xf]
  %v56 = vld [vmem:[%s0 + $0x14] sm:$0xf]
  %v57 = vld [vmem:[%s0 + $0x18] sm:$0xf]
  %v58 = vld [vmem:[%s0 + $0x1c] sm:$0xf]
  %v59 = vld [vmem:[%s0 + $0x20] sm:$0xf]
  %v60 = vld [vmem:[%s0 + $0x24] sm:$0xf]
  %v61 = vld [vmem:[%s0 + $0x28] sm:$0xf]
  %v62 = vld [vmem:[%s0 + $0x2c] sm:$0xf]
  %v63 = vld [vmem:[%s0 + $0x30] sm:$0xf]
  %v64 = vld [vmem:[%s0 + $0x34] sm:$0xf]
  %v65 = vld [vmem:[%s0 + $0x38] sm:$0xf]
  %v66 = vld [vmem:[%s0 + $0x3c] sm:$0xf]
  %v67 = vld [vmem:[%s1] sm:$0xf]
  %v68 = vld [vmem:[%s1 + $0x4] sm:$0xf]
  %v69 = vld [vmem:[%s1 + $0x8] sm:$0xf]
  %v70 = vld [vmem:[%s1 + $0xc] sm:$0xf]
  %v71 = vld [vmem:[%s1 + $0x10] sm:$0xf]
  %v72 = vld [vmem:[%s1 + $0x14] sm:$0xf]
  %v73 = vld [vmem:[%s1 + $0x18] sm:$0xf]
  %v74 = vld [vmem:[%s1 + $0x1c] sm:$0xf]
  %v75 = vld [vmem:[%s1 + $0x20] sm:$0xf]
  %v76 = vld [vmem:[%s1 + $0x24] sm:$0xf]
  %v77 = vld [vmem:[%s1 + $0x28] sm:$0xf]
  %v78 = vld [vmem:[%s1 + $0x2c] sm:$0xf]
  %v79 = vld [vmem:[%s1 + $0x30] sm:$0xf]
  %v80 = vld [vmem:[%s1 + $0x34] sm:$0xf]
  %v81 = vld [vmem:[%s1 + $0x38] sm:$0xf]
  %v82 = vld [vmem:[%s1 + $0x3c] sm:$0xf]
  %v99 = vunpack.c.l.b16 %v51
  %v100 = vunpack.c.l.b16 %v52
  %v101 = vunpack.c.l.b16 %v53
  %v102 = vunpack.c.l.b16 %v54
  %v103 = vunpack.c.l.b16 %v55
  %v104 = vunpack.c.l.b16 %v56
  %v105 = vunpack.c.l.b16 %v57
  %v106 = vunpack.c.l.b16 %v58
  %v107 = vunpack.c.l.b16 %v59
  %v108 = vunpack.c.l.b16 %v60
  %v109 = vunpack.c.l.b16 %v61
  %v110 = vunpack.c.l.b16 %v62
  %v111 = vunpack.c.l.b16 %v63
  %v112 = vunpack.c.l.b16 %v64
  %v113 = vunpack.c.l.b16 %v65
  %v114 = vunpack.c.l.b16 %v66
  %v115 = vpack.c.b16 %v100, %v99
  %v116 = vpack.c.b16 %v102, %v101
  %v117 = vpack.c.b16 %v104, %v103
  %v118 = vpack.c.b16 %v106, %v105
  %v119 = vpack.c.b16 %v108, %v107
  %v120 = vpack.c.b16 %v110, %v109
  %v121 = vpack.c.b16 %v112, %v111
  %v122 = vpack.c.b16 %v114, %v113
  %v147 = vunpack.c.l.b16 %v67
  %v148 = vunpack.c.l.b16 %v68
  %v149 = vunpack.c.l.b16 %v69
  %v150 = vunpack.c.l.b16 %v70
  %v151 = vunpack.c.l.b16 %v71
  %v152 = vunpack.c.l.b16 %v72
  %v153 = vunpack.c.l.b16 %v73
  %v154 = vunpack.c.l.b16 %v74
  %v155 = vunpack.c.l.b16 %v75
  %v156 = vunpack.c.l.b16 %v76
  %v157 = vunpack.c.l.b16 %v77
  %v158 = vunpack.c.l.b16 %v78
  %v159 = vunpack.c.l.b16 %v79
  %v160 = vunpack.c.l.b16 %v80
  %v161 = vunpack.c.l.b16 %v81
  %v162 = vunpack.c.l.b16 %v82
  %v163 = vpack.c.b16 %v148, %v147
  %v164 = vpack.c.b16 %v150, %v149
  %v165 = vpack.c.b16 %v152, %v151
  %v166 = vpack.c.b16 %v154, %v153
  %v167 = vpack.c.b16 %v156, %v155
  %v168 = vpack.c.b16 %v158, %v157
  %v169 = vpack.c.b16 %v160, %v159
  %v170 = vpack.c.b16 %v162, %v161
  %179 = vmatpush.bf16.msra.mxu0 %v170
  %180 = vmatpush.bf16.msra.mxu0 %v169
  %181 = vmatpush.bf16.msra.mxu0 %v168
  %182 = vmatpush.bf16.msra.mxu0 %v167
  %183 = vmatpush.bf16.msra.mxu0 %v166
  %184 = vmatpush.bf16.msra.mxu0 %v165
  %185 = vmatpush.bf16.msra.mxu0 %v164
  %186 = vmatpush.bf16.msra.mxu0 %v163
  %187 = vmatmul.bf16.gmra.mxu0 %v115
  %v188 = vpop.f32.mrf.mxu0
  %v189 = vadd.f32 0.0, %v188
  %v190 = vpop.f32.mrf.mxu0
  %v191 = vadd.f32 0.0, %v190
  %192 = vmatmul.bf16.gmra.mxu0 %v116
  %v193 = vpop.f32.mrf.mxu0
  %v194 = vadd.f32 0.0, %v193
  %v195 = vpop.f32.mrf.mxu0
  %v196 = vadd.f32 0.0, %v195
  %197 = vmatmul.bf16.gmra.mxu0 %v117
  %v198 = vpop.f32.mrf.mxu0
  %v199 = vadd.f32 0.0, %v198
  %v200 = vpop.f32.mrf.mxu0
  %v201 = vadd.f32 0.0, %v200
  %202 = vmatmul.bf16.gmra.mxu0 %v118
  %v203 = vpop.f32.mrf.mxu0
  %v204 = vadd.f32 0.0, %v203
  %v205 = vpop.f32.mrf.mxu0
  %v206 = vadd.f32 0.0, %v205
  %207 = vmatmul.bf16.gmra.mxu0 %v119
  %v208 = vpop.f32.mrf.mxu0
  %v209 = vadd.f32 0.0, %v208
  %v210 = vpop.f32.mrf.mxu0
  %v211 = vadd.f32 0.0, %v210
  %212 = vmatmul.bf16.gmra.mxu0 %v120
  %v213 = vpop.f32.mrf.mxu0
  %v214 = vadd.f32 0.0, %v213
  %v215 = vpop.f32.mrf.mxu0
  %v216 = vadd.f32 0.0, %v215
  %217 = vmatmul.bf16.gmra.mxu0 %v121
  %v218 = vpop.f32.mrf.mxu0
  %v219 = vadd.f32 0.0, %v218
  %v220 = vpop.f32.mrf.mxu0
  %v221 = vadd.f32 0.0, %v220
  %222 = vmatmul.bf16.gmra.mxu0 %v122
  %v223 = vpop.f32.mrf.mxu0
  %v224 = vadd.f32 0.0, %v223
  %v225 = vpop.f32.mrf.mxu0
  %v226 = vadd.f32 0.0, %v225
  %227 = vdwg.mxu0
  %v228 = vadd.f32 %v35, %v189
  %v229 = vadd.f32 %v36, %v191
  %v230 = vadd.f32 %v37, %v194
  %v231 = vadd.f32 %v38, %v196
  %v232 = vadd.f32 %v39, %v199
  %v233 = vadd.f32 %v40, %v201
  %v234 = vadd.f32 %v41, %v204
  %v235 = vadd.f32 %v42, %v206
  %v236 = vadd.f32 %v43, %v209
  %v237 = vadd.f32 %v44, %v211
  %v238 = vadd.f32 %v45, %v214
  %v239 = vadd.f32 %v46, %v216
  %v240 = vadd.f32 %v47, %v219
  %v241 = vadd.f32 %v48, %v221
  %v242 = vadd.f32 %v49, %v224
  %v243 = vadd.f32 %v50, %v226
  %vm244 = vcmask 261120
  %245 = vst.msk [vmem:[#allocation2] sm:$0xff] %vm244, %v228
  %246 = vst.msk [vmem:[#allocation2 + $0x8] sm:$0xff] %vm244, %v229
  %247 = vst.msk [vmem:[#allocation2 + $0x10] sm:$0xff] %vm244, %v230
  %248 = vst.msk [vmem:[#allocation2 + $0x18] sm:$0xff] %vm244, %v231
  %249 = vst.msk [vmem:[#allocation2 + $0x20] sm:$0xff] %vm244, %v232
  %250 = vst.msk [vmem:[#allocation2 + $0x28] sm:$0xff] %vm244, %v233
  %251 = vst.msk [vmem:[#allocation2 + $0x30] sm:$0xff] %vm244, %v234
  %252 = vst.msk [vmem:[#allocation2 + $0x38] sm:$0xff] %vm244, %v235
  %253 = vst.msk [vmem:[#allocation2 + $0x40] sm:$0xff] %vm244, %v236
  %254 = vst.msk [vmem:[#allocation2 + $0x48] sm:$0xff] %vm244, %v237
  %255 = vst.msk [vmem:[#allocation2 + $0x50] sm:$0xff] %vm244, %v238
  %256 = vst.msk [vmem:[#allocation2 + $0x58] sm:$0xff] %vm244, %v239
  %257 = vst.msk [vmem:[#allocation2 + $0x60] sm:$0xff] %vm244, %v240
  %258 = vst.msk [vmem:[#allocation2 + $0x68] sm:$0xff] %vm244, %v241
  %259 = vst.msk [vmem:[#allocation2 + $0x70] sm:$0xff] %vm244, %v242
  %260 = vst.msk [vmem:[#allocation2 + $0x78] sm:$0xff] %vm244, %v243
  // Predicated region
  $region18: #{vgcn_encoder_pallas.3} parent=0 // pred_check
    %p261 = pneg %p14
  $region19: #{vgcn_encoder_pallas.3} parent=0 // pred_check_branch
    %263 = sbr.rel (%p261) target = $region21
  $region20: #{vgcn_encoder_pallas.3} parent=0 // pred_region
    %v264 = vld [vmem:[#allocation2] sm:$0xff]
    %v265 = vld [vmem:[#allocation2 + $0x8] sm:$0xff]
    %v266 = vld [vmem:[#allocation2 + $0x10] sm:$0xff]
    %v267 = vld [vmem:[#allocation2 + $0x18] sm:$0xff]
    %v268 = vld [vmem:[#allocation2 + $0x20] sm:$0xff]
    %v269 = vld [vmem:[#allocation2 + $0x28] sm:$0xff]
    %v270 = vld [vmem:[#allocation2 + $0x30] sm:$0xff]
    %v271 = vld [vmem:[#allocation2 + $0x38] sm:$0xff]
    %v272 = vld [vmem:[#allocation2 + $0x40] sm:$0xff]
    %v273 = vld [vmem:[#allocation2 + $0x48] sm:$0xff]
    %v274 = vld [vmem:[#allocation2 + $0x50] sm:$0xff]
    %v275 = vld [vmem:[#allocation2 + $0x58] sm:$0xff]
    %v276 = vld [vmem:[#allocation2 + $0x60] sm:$0xff]
    %v277 = vld [vmem:[#allocation2 + $0x68] sm:$0xff]
    %v278 = vld [vmem:[#allocation2 + $0x70] sm:$0xff]
    %v279 = vld [vmem:[#allocation2 + $0x78] sm:$0xff]
    %v280 = vld [vmem:[%s2] sm:$0x1]
    %v282 = vperm.slane %v280, 0
    %v284 = vadd.f32 %v264, %v282
    %v285 = vadd.f32 %v265, %v282
    %v286 = vadd.f32 %v266, %v282
    %v287 = vadd.f32 %v267, %v282
    %v288 = vadd.f32 %v268, %v282
    %v289 = vadd.f32 %v269, %v282
    %v290 = vadd.f32 %v270, %v282
    %v291 = vadd.f32 %v271, %v282
    %v292 = vadd.f32 %v272, %v282
    %v293 = vadd.f32 %v273, %v282
    %v294 = vadd.f32 %v274, %v282
    %v295 = vadd.f32 %v275, %v282
    %v296 = vadd.f32 %v276, %v282
    %v297 = vadd.f32 %v277, %v282
    %v298 = vadd.f32 %v278, %v282
    %v299 = vadd.f32 %v279, %v282
    %300 = vst.msk [vmem:[%s3] sm:$0xff] %vm244, %v284
    %301 = vst.msk [vmem:[%s3 + $0x8] sm:$0xff] %vm244, %v285
    %302 = vst.msk [vmem:[%s3 + $0x10] sm:$0xff] %vm244, %v286
    %303 = vst.msk [vmem:[%s3 + $0x18] sm:$0xff] %vm244, %v287
    %304 = vst.msk [vmem:[%s3 + $0x20] sm:$0xff] %vm244, %v288
    %305 = vst.msk [vmem:[%s3 + $0x28] sm:$0xff] %vm244, %v289
    %306 = vst.msk [vmem:[%s3 + $0x30] sm:$0xff] %vm244, %v290
    %307 = vst.msk [vmem:[%s3 + $0x38] sm:$0xff] %vm244, %v291
    %308 = vst.msk [vmem:[%s3 + $0x40] sm:$0xff] %vm244, %v292
    %309 = vst.msk [vmem:[%s3 + $0x48] sm:$0xff] %vm244, %v293
    %310 = vst.msk [vmem:[%s3 + $0x50] sm:$0xff] %vm244, %v294
    %311 = vst.msk [vmem:[%s3 + $0x58] sm:$0xff] %vm244, %v295
    %312 = vst.msk [vmem:[%s3 + $0x60] sm:$0xff] %vm244, %v296
    %313 = vst.msk [vmem:[%s3 + $0x68] sm:$0xff] %vm244, %v297
    %314 = vst.msk [vmem:[%s3 + $0x70] sm:$0xff] %vm244, %v298
    %315 = vst.msk [vmem:[%s3 + $0x78] sm:$0xff] %vm244, %v299
  $region21: #{vgcn_encoder_pallas.3} parent=0 // pred_fallthru
    _
  // Predicated region
  $region22: #{vgcn_encoder_pallas.3} parent=0 // pred_check
    _
  $region23: #{vgcn_encoder_pallas.3} parent=0 // pred_check_branch
    %317 = sbr.rel (0) target = $region25
  $region24: #{vgcn_encoder_pallas.3} parent=0 // pred_region
    _
  $region25: #{vgcn_encoder_pallas.3} parent=0 // pred_fallthru
    _
  // Predicated region
  $region26: #{vgcn_encoder_pallas.3} parent=0 // pred_check
    _
  $region27: #{vgcn_encoder_pallas.3} parent=0 // pred_check_branch
    %319 = sbr.rel (0) target = $region29
  $region28: #{vgcn_encoder_pallas.3} parent=0 // pred_region
    _
  $region29: #{vgcn_encoder_pallas.3} parent=0 // pred_fallthru
    _

</llo_original>
